<compile_context>
chip_gen: v7x
topology: tpu7x:2x2x1
jax: 0.10.0
libtpu: 0.0.40
codegen_flags: <defaults>
</compile_context>

<pallas_src>
import jax
import jax.numpy as jnp
from jax.experimental import pallas as pl
from jax.experimental.pallas import tpu as pltpu


def _round_up(n, m):
    return ((n + m - 1) // m) * m


def _reward_kernel(x_ref, w_ref, o_ref):
    # x_ref: (tb, C) input tile; w_ref: (1, C) zero-padded weight row (resident);
    # o_ref: (1, tb) lane-dense output row for this tile.
    x = x_ref[...].astype(jnp.float32)
    w = w_ref[...].astype(jnp.float32)            # broadcasts over rows
    s = jnp.sum(x * w, axis=-1)                   # (tb,): VPU mul + lane reduce, f32 acc
    # Lane-dense store: one result per lane; the sublane->lane relayout rides the
    # XLU/extended slots, which are idle in this kernel.
    o_ref[...] = s[None, :].astype(o_ref.dtype)


def reward_linear_no_action(x, weight, num_z, *, block_b=4096,
                            vmem_budget_bytes=8 * 1024 * 1024,
                            force_pallas=False):
    """Computes x[:, :num_z] @ weight.T with weight in PyTorch layout [1, num_z].

    x: [B, F] with F >= num_z. Returns [B, 1] in x.dtype
    (matches nn.Linear(z, 1, bias=False)).
    """
    B, F = x.shape
    assert weight.shape == (1, num_z) and F >= num_z
    itemsize = jnp.dtype(x.dtype).itemsize

    # --- small-problem fast path: launch + grid-step overhead >> work ------------
    if (not force_pallas) and B * F * itemsize < 256 * 1024:
        return jnp.dot(x[:, :num_z], weight.T.astype(x.dtype)).astype(x.dtype)

    # --- streamed column width ----------------------------------------------------
    # Stream only the leading round_up(num_z, 128) columns when that clearly cuts
    # HBM bytes (kernel is HBM-bound); otherwise stream the full row. Either choice
    # satisfies the (8, 128) block rule (multiple of 128, or equal to the full dim).
    z_pad = _round_up(num_z, 128)
    if F >= 128 and 2 * z_pad <= F:
        C = z_pad
    else:
        C = F

    # Zero-pad the weight row to the streamed width: the z-mask becomes implicit.
    w_pad = jnp.zeros((1, C), weight.dtype).at[:, :num_z].set(weight)

    # --- batch tiling: F-aware, VMEM-budgeted --------------------------------------
    # Double-buffered input VMEM is 2 * tb * C * itemsize; keep it under the budget.
    tb_budget = max(8, (vmem_budget_bytes // (2 * C * itemsize)) // 8 * 8)
    tb_cap = max(8, min(max(8, (block_b // 8) * 8), tb_budget))
    if B <= tb_cap:
        tb = B                                    # single full-batch block (always legal)
    else:
        tb = tb_cap
        if pl.cdiv(B, tb) < 4:
            # v7x megacore: 2 TCs share the "parallel" axis; keep >= 2 tiles per core
            # so the auto pipeline can overlap DMA with compute.
            tb = max(8, min(tb_cap, _round_up(pl.cdiv(B, 4), 8)))
    grid_b = pl.cdiv(B, tb)

    cost = pl.CostEstimate(
        flops=2 * B * C,
        transcendentals=0,
        bytes_accessed=B * C * itemsize + C * itemsize + B * itemsize,
    )

    out2d = pl.pallas_call(
        _reward_kernel,
        out_shape=jax.ShapeDtypeStruct((grid_b, tb), x.dtype),
        grid_spec=pl.GridSpec(
            grid=(grid_b,),
            in_specs=[
                # Streamed batch tile of the leading C columns (strided row DMA when
                # C < F); no wrapper-side slice copy, single HBM pass over what we use.
                pl.BlockSpec((tb, C), lambda i: (i, 0)),
                # Tiny zero-padded weight row stays resident across the whole grid.
                pl.BlockSpec((1, C), lambda i: (0, 0)),
            ],
            # Lane-dense output: last block dim is tb (= full last dim of the output
            # array), so stores are unmasked full-lane writes.
            out_specs=pl.BlockSpec((1, tb), lambda i: (i, 0)),
        ),
        compiler_params=pltpu.CompilerParams(
            dimension_semantics=("parallel",),
        ),
        cost_estimate=cost,
    )(x, w_pad)

    # Rows produced by the clipped partial last tile are garbage; drop them here.
    # (No cross-row reduction happens anywhere, so they never contaminate results.)
    return out2d.reshape(grid_b * tb)[:B].reshape(B, 1)


if __name__ == "__main__":
    key = jax.random.PRNGKey(0)
    k_x, k_w, k_x2 = jax.random.split(key, 3)

    # Module config: z latent dims, a action dims (actions unused in forward).
    Z, A = 32, 4

    # Deterministic param init mirroring nn.Linear default U(-1/sqrt(z), 1/sqrt(z)).
    bound = 1.0 / jnp.sqrt(jnp.float32(Z))
    weight = jax.random.uniform(k_w, (1, Z), jnp.float32, -bound, bound)  # [out=1, in=z]

    # Case 1: module's native toy size, forced through the Pallas path (single block).
    B1 = 8
    x1 = jax.random.normal(k_x, (B1, Z + A), jnp.float32)
    out1 = jax.block_until_ready(
        reward_linear_no_action(x1, weight, Z, force_pallas=True))
    ref1 = x1[:, :Z] @ weight.T
    assert out1.shape == (B1, 1)
    assert jnp.allclose(out1, ref1, atol=1e-5, rtol=1e-5)

    # Case 2: multi-tile Pallas path with a clipped partial last tile
    # (small block cap just to exercise the grid / lane-dense writeback cheaply).
    B2 = 520
    x2 = jax.random.normal(k_x2, (B2, Z + A), jnp.float32)
    out2 = jax.block_until_ready(
        reward_linear_no_action(x2, weight, Z, block_b=128, force_pallas=True))
    ref2 = x2[:, :Z] @ weight.T
    assert out2.shape == (B2, 1)
    assert jnp.allclose(out2, ref2, atol=1e-5, rtol=1e-5)

    # Case 3: small-problem fast path (plain fused XLA dot).
    out3 = jax.block_until_ready(reward_linear_no_action(x1, weight, Z))
    assert jnp.allclose(out3, ref1, atol=1e-5, rtol=1e-5)

    print("KERNEL_OK")
</pallas_src>

<mosaic_0001>
module attributes {stable_mosaic.version = 11 : i64} {
  func.func @_reward_kernel(%arg0: i32, %arg1: memref<8x36xf32, #tpu.memory_space<vmem>>, %arg2: memref<1x36xf32, #tpu.memory_space<vmem>>, %arg3: memref<1x8xf32, #tpu.memory_space<vmem>>) attributes {dimension_semantics = [#tpu.dimension_semantics<parallel>], iteration_bounds = array<i64: 1>, scalar_prefetch = 0 : i64, scratch_operands = 0 : i64, tpu.core_type = #tpu.core_type<tc>, window_params = [{transform_indices = @transform_0, window_bounds = array<i64: 8, 36>}, {pipeline_mode = #tpu.pipeline_mode<synchronous>, transform_indices = @transform_1, window_bounds = array<i64: 1, 36>}, {transform_indices = @transform_2, window_bounds = array<i64: 1, 8>}]} {
    %c0 = arith.constant 0 : index
    %c0_0 = arith.constant 0 : index
    %0 = vector.load %arg1[%c0, %c0_0] : memref<8x36xf32, #tpu.memory_space<vmem>>, vector<8x36xf32>
    %c0_1 = arith.constant 0 : index
    %c0_2 = arith.constant 0 : index
    %1 = vector.load %arg2[%c0_1, %c0_2] : memref<1x36xf32, #tpu.memory_space<vmem>>, vector<1x36xf32>
    %2 = vector.broadcast %1 : vector<1x36xf32> to vector<8x36xf32>
    %3 = arith.mulf %0, %2 : vector<8x36xf32>
    %cst = arith.constant dense<0.000000e+00> : vector<8xf32>
    %4 = vector.multi_reduction <add>, %3, %cst [1] : vector<8x36xf32> to vector<8xf32>
    %5 = vector.shape_cast %4 : vector<8xf32> to vector<1x8xf32>
    %c0_3 = arith.constant 0 : index
    %c0_4 = arith.constant 0 : index
    %6 = vector.load %arg3[%c0_3, %c0_4] : memref<1x8xf32, #tpu.memory_space<vmem>>, vector<1x8xf32>
    tpu.vector_store %arg3[%c0_3, %c0_4], %5 {strides = array<i32>} : memref<1x8xf32, #tpu.memory_space<vmem>>, vector<1x8xf32>,
    return
  }
  func.func @transform_0(%arg0: i32) -> (i32, i32) {
    %c0_i32 = arith.constant 0 : i32
    %c0_i32_0 = arith.constant 0 : i32
    return %arg0, %c0_i32 : i32, i32
  }
  func.func @transform_1(%arg0: i32) -> (i32, i32) {
    %c0_i32 = arith.constant 0 : i32
    %c0_i32_0 = arith.constant 0 : i32
    %c0_i32_1 = arith.constant 0 : i32
    return %c0_i32, %c0_i32_0 : i32, i32
  }
  func.func @transform_2(%arg0: i32) -> (i32, i32) {
    %c0_i32 = arith.constant 0 : i32
    %c0_i32_0 = arith.constant 0 : i32
    return %arg0, %c0_i32 : i32, i32
  }
}

</mosaic_0001>

<llo_original>
// kernel: tpu_custom_call.1
$region0: #{tpu_custom_call.1}
  #allocation0 [shape = 'u32[]', space=smem, size = 0x4, offset = 0x4, fixed_abs, tag = 'smem constant byte address 0x4 - core index']
  #allocation1 [shape = 'u32[144,128]{1,0:T(1,128)}', space=vmem, size = 0x12000, scoped, tag = 'internal scratch']
  %s0 = inlined_call_operand.hbm [shape: f32[8,36], index: 0, kind: input, shape index: {}]
  %s1 = inlined_call_operand.vmem [shape: f32[1,36], index: 1, kind: input, shape index: {}]
  %s2 = inlined_call_operand.hbm [shape: f32[1,8], index: 2, kind: output, shape index: {}]
  %s3 = sld [smem:[#allocation0]]
  $region22: #{tpu_custom_call.1} parent=0
    _
  %s5 = ssub.s32 1, %s3
  %s6 = scalar_select 0, %s5, %s3
  $region1: #{tpu_custom_call.1} parent=0
    #allocation2 [shape = 'u8[4096]{0}', space=vmem, size = 0x1000, scoped, tag = 'input window, operand 0, single buffered']
    #allocation3 [shape = 's32[1]{0}', space=sflag, size = 0x4, scoped, tag = 'scoped memory for tpu_custom_call.1']
    #allocation4 [shape = 's32[1]{0}', space=sflag, size = 0x4, scoped, tag = 'scoped memory for tpu_custom_call.1']
    #allocation5 [shape = 'u8[512]{0}', space=vmem, size = 0x400, scoped, tag = 'output window, operand 0, single buffered']
    %7 = vsyncpa [#allocation3], 0
    %8 = vsyncpa [#allocation4], 0
    // Predicated region
    $region2: #{tpu_custom_call.1} parent=1 // pred_check
      _
    $region3: #{tpu_custom_call.1} parent=1 // pred_check_branch
      %10 = sbr.rel (0) target = $region5
    $region4: #{tpu_custom_call.1} parent=1 // pred_region
      %s12 = ssub.s32 128, 128
      %13 = vsyncadd [#allocation3], %s12
      %s15 = sshll.u32 [#allocation2], 4
      %s16 = int_to_ptr.vmem [resolvable:$true] %s15
      %18 = dma.hbm_to_vmem [thread:$0]  %s0, 128, %s16, [#allocation3]
    $region5: #{tpu_custom_call.1} parent=1 // pred_fallthru
      _
    // Predicated region
    $region6: #{tpu_custom_call.1} parent=1 // pred_check
      _
    $region7: #{tpu_custom_call.1} parent=1 // pred_check_branch
      %20 = sbr.rel (0) target = $region9
    $region8: #{tpu_custom_call.1} parent=1 // pred_region
      _
    $region9: #{tpu_custom_call.1} parent=1 // pred_fallthru
      _
    // Predicated region
    $region10: #{tpu_custom_call.1} parent=1 // pred_check
      _
    $region11: #{tpu_custom_call.1} parent=1 // pred_check_branch
      %22 = sbr.rel (0) target = $region13
    $region12: #{tpu_custom_call.1} parent=1 // pred_region
      %23 = dma.done [#allocation3], 128
    $region13: #{tpu_custom_call.1} parent=1 // pred_fallthru
      _
    %v24 = vld [vmem:[#allocation2] sm:$0xff]
    %v25 = vld [vmem:[%s1] sm:$0x1]
    %v27 = vlaneseq
    %v28 = vshrl.u32 %v27, 7
    %v29 = vsub.s32 0, %v28
    %v30 = vrot.slane %v25, %v29
    %v32 = vmul.f32 %v24, %v30
    %vm33 = vcmask 293888
    %v34 = vsel %vm33, %v32, 0.0
    %35 = vadd.xlane.f32.xlu0 %v34
    %v36 = vpop.xlane.xlu0 %35
    %v38 = vlaneseq
    %v39 = vand.u32 %v38, 127
    %v40 = vlaneseq
    %v41 = vshrl.u32 %v40, 7
    %v42 = vsub.s32 %v39, %v41
    %v43 = vrot.slane %v36, %v42
    %vm45 = vcmask 57344
    %46 = vst.msk [vmem:[#allocation5] sm:$0x1] %vm45, %v43
    // Predicated region
    $region14: #{tpu_custom_call.1} parent=1 // pred_check
      _
    $region15: #{tpu_custom_call.1} parent=1 // pred_check_branch
      %48 = sbr.rel (0) target = $region17
    $region16: #{tpu_custom_call.1} parent=1 // pred_region
      %s50 = ssub.s32 16, 16
      %51 = vsyncadd [#allocation4], %s50
      %s53 = sshll.u32 [#allocation5], 4
      %s54 = int_to_ptr.vmem [resolvable:$true] %s53
      %56 = dma.vmem_to_hbm [thread:$0]  %s54, 16, %s2, [#allocation4]
    $region17: #{tpu_custom_call.1} parent=1 // pred_fallthru
      _
    // Predicated region
    $region18: #{tpu_custom_call.1} parent=1 // pred_check
      _
    $region19: #{tpu_custom_call.1} parent=1 // pred_check_branch
      %58 = sbr.rel (0) target = $region21
    $region20: #{tpu_custom_call.1} parent=1 // pred_region
      %59 = dma.done [#allocation4], 16
    $region21: #{tpu_custom_call.1} parent=1 // pred_fallthru
      _
    %60 = vsyncpa [#allocation3], 1
    %61 = vsyncpa [#allocation4], 1

</llo_original>
